<compile_context>
chip_gen: v6e
topology: v6e:2x2x1
jax: 0.10.0
libtpu: 0.0.40
codegen_flags: <defaults>
</compile_context>

<pallas_src>
import functools

import jax
import jax.numpy as jnp
from jax.experimental import pallas as pl
from jax.experimental.pallas import tpu as pltpu


def _xent_kernel(logits_ref, tgt_ref, out_ref, *, n_rows, row_tile):
    """One grid step: `row_tile` rows of logits -> partial sum of row losses.

    logits_ref: (row_tile, V)  native dtype (bf16/f32); cast fused in-kernel
    tgt_ref:    (row_tile, 1)  int32 target class indices (assumed in [0, V))
    out_ref:    (1, 8, 128)    f32 lane-dense block, partial sum replicated
    """
    i = pl.program_id(0)

    x = logits_ref[...]                                        # (T, V) native
    tile, vocab = x.shape

    # row max on the native tile (exact for bf16), promoted to f32 for the math
    row_max = jnp.max(x, axis=-1, keepdims=True).astype(jnp.float32)   # (T, 1)

    # one-hot gather of the UN-shifted target logit.  Only a (1, V) iota and the
    # i1 mask are materialized; the selected tensor has a single nonzero per row
    # so summing in the native dtype is exact.
    tgt = tgt_ref[...]                                         # (T, 1) int32
    col = jax.lax.broadcasted_iota(jnp.int32, (1, vocab), 1)   # (1, V)
    onehot = col == tgt                                        # (T, V) bool
    tgt_raw = jnp.sum(jnp.where(onehot, x, jnp.zeros([], x.dtype)),
                      axis=-1, keepdims=True).astype(jnp.float32)       # x[tgt]

    # single fused pass: cast -> shift -> exp -> accumulate
    shifted = x.astype(jnp.float32) - row_max                  # (T, V) f32
    sum_exp = jnp.sum(jnp.exp(shifted), axis=-1, keepdims=True)

    # loss_row = lse - x[tgt] = row_max + log(sum_exp) - x[tgt]
    row_loss = row_max + jnp.log(sum_exp) - tgt_raw            # (T, 1)

    # mask rows of the (possibly partial) edge tile — select-based on purpose,
    # so NaN/Inf from garbage edge rows cannot leak into the partial sum.
    row_ids = i * row_tile + jax.lax.broadcasted_iota(jnp.int32, (tile, 1), 0)
    row_loss = jnp.where(row_ids < n_rows, row_loss, 0.0)

    out_ref[...] = jnp.broadcast_to(
        jnp.sum(row_loss).reshape(1, 1, 1), out_ref.shape)


def _round_up(x, m):
    return (x + m - 1) // m * m


def _device_budgets():
    """(block_bytes, vmem_limit_bytes) sized from the chip's physical VMEM."""
    try:
        vmem_cap = pltpu.get_tpu_info().vmem_capacity_bytes
    except Exception:
        vmem_cap = 64 * 1024 * 1024                     # conservative (v7x-like)
    if vmem_cap >= 100 * 1024 * 1024:
        # v5e / v6e: 128 MiB VMEM, HBM-bound -> big tiles, fewer grid steps
        return 6 * 1024 * 1024, 96 * 1024 * 1024
    # v7x: 64 MiB VMEM; keep (2x native block + ~2x f32 temps) under ~40 MiB
    return 4 * 1024 * 1024, 40 * 1024 * 1024


def _pick_row_tile(n_rows, vocab, dtype_bytes, block_bytes):
    # sublane packing granularity: 8 rows (f32), 16 (bf16), 32 (8-bit)
    gran = max(8, 32 // dtype_bytes)
    rt = block_bytes // max(1, vocab * dtype_bytes)
    rt = max(gran, min(2048, (rt // gran) * gran))
    # never make the tile (much) bigger than the row count
    rt = min(rt, _round_up(n_rows, gran))
    return rt


def cross_entropy_loss(logits, targets, *, block_bytes=None):
    """Mean cross-entropy: -mean(log_softmax(logits)[..., target]).

    logits:  (..., V) float (bf16 or f32; streamed in native dtype)
    targets: (...)    int, values in [0, V)
    Returns a scalar f32 loss.
    """
    vocab = logits.shape[-1]
    logits2d = logits.reshape(-1, vocab)                 # keep native dtype
    n_rows = logits2d.shape[0]
    dtype_bytes = jnp.dtype(logits2d.dtype).itemsize

    auto_block, vmem_limit = _device_budgets()
    if block_bytes is None:
        block_bytes = auto_block

    row_tile = _pick_row_tile(n_rows, vocab, dtype_bytes, block_bytes)
    n_tiles = pl.cdiv(n_rows, row_tile)
    n_pad = n_tiles * row_tile

    # targets are tiny: pad so every tile reads defined indices
    # (padded rows are masked out of the loss in-kernel)
    targets1d = targets.reshape(-1).astype(jnp.int32)
    targets2d = jnp.pad(targets1d, (0, n_pad - n_rows)).reshape(n_pad, 1)

    kernel = functools.partial(_xent_kernel, n_rows=n_rows, row_tile=row_tile)

    partials = pl.pallas_call(
        kernel,
        out_shape=jax.ShapeDtypeStruct((n_tiles, 8, 128), jnp.float32),
        grid_spec=pltpu.PrefetchScalarGridSpec(
            num_scalar_prefetch=0,
            grid=(n_tiles,),
            in_specs=[
                pl.BlockSpec((row_tile, vocab), lambda i: (i, 0)),
                pl.BlockSpec((row_tile, 1), lambda i: (i, 0)),
            ],
            out_specs=pl.BlockSpec((1, 8, 128), lambda i: (i, 0, 0)),
        ),
        compiler_params=pltpu.CompilerParams(
            dimension_semantics=("parallel",),          # megacore split on v7x
            vmem_limit_bytes=vmem_limit,
        ),
    )(logits2d, targets2d)

    # per-tile partial is replicated over its (8,128) block; final mean in XLA
    return jnp.sum(partials[:, 0, 0]) / jnp.float32(n_rows)


def _reference(logits, targets):
    logp = jax.nn.log_softmax(logits.astype(jnp.float32), axis=-1)
    tgt_logp = jnp.take_along_axis(
        logp, targets[..., None].astype(jnp.int32), axis=-1)[..., 0]
    return -jnp.mean(tgt_logp)


if __name__ == "__main__":
    key = jax.random.PRNGKey(0)
    k1, k2, k3, k4 = jax.random.split(key, 4)

    # GPT-lite-ish small shapes, f32 logits (tile divides rows exactly)
    batch, seq, vocab = 2, 8, 32
    logits = jax.random.normal(k1, (batch, seq, vocab), dtype=jnp.float32)
    targets = jax.random.randint(k2, (batch, seq), 0, vocab, dtype=jnp.int32)
    loss = jax.block_until_ready(cross_entropy_loss(logits, targets))
    ref = jax.block_until_ready(_reference(logits, targets))
    assert jnp.allclose(loss, ref, atol=1e-5, rtol=1e-5), (loss, ref)

    # bf16 logits, row count that does NOT divide the tile and a multi-tile
    # grid (small block budget) -> exercises edge masking + XLA partial reduce
    b2, s2, v2 = 3, 7, 160
    logits_bf16 = jax.random.normal(k3, (b2, s2, v2), dtype=jnp.bfloat16)
    targets2 = jax.random.randint(k4, (b2, s2), 0, v2, dtype=jnp.int32)
    loss2 = jax.block_until_ready(
        cross_entropy_loss(logits_bf16, targets2, block_bytes=8 * 1024))
    ref2 = jax.block_until_ready(_reference(logits_bf16, targets2))
    assert jnp.allclose(loss2, ref2, atol=2e-2, rtol=2e-2), (loss2, ref2)

    print("KERNEL_OK")
</pallas_src>

<mosaic_0001>
module attributes {stable_mosaic.version = 11 : i64} {
  func.func @_xent_kernel(%arg0: i32, %arg1: memref<16x32xf32, #tpu.memory_space<vmem>>, %arg2: memref<16x1xi32, #tpu.memory_space<vmem>>, %arg3: memref<1x8x128xf32, #tpu.memory_space<vmem>>) attributes {dimension_semantics = [#tpu.dimension_semantics<parallel>], iteration_bounds = array<i64: 1>, scalar_prefetch = 0 : i64, scratch_operands = 0 : i64, tpu.core_type = #tpu.core_type<tc>, window_params = [{transform_indices = @transform_0, window_bounds = array<i64: 16, 32>}, {transform_indices = @transform_1, window_bounds = array<i64: 16, 1>}, {transform_indices = @transform_2, window_bounds = array<i64: 1, 8, 128>}]} {
    %c0 = arith.constant 0 : index
    %c0_0 = arith.constant 0 : index
    %0 = vector.load %arg1[%c0, %c0_0] : memref<16x32xf32, #tpu.memory_space<vmem>>, vector<16x32xf32>
    %cst = arith.constant dense<0xFF800000> : vector<16xf32>
    %1 = vector.multi_reduction <maximumf>, %0, %cst [1] : vector<16x32xf32> to vector<16xf32>
    %2 = vector.shape_cast %1 : vector<16xf32> to vector<16x1xf32>
    %c0_1 = arith.constant 0 : index
    %c0_2 = arith.constant 0 : index
    %3 = vector.load %arg2[%c0_1, %c0_2] : memref<16x1xi32, #tpu.memory_space<vmem>>, vector<16x1xi32>
    %4 = tpu.iota {dimensions = array<i32: 1>} : vector<1x32xi32>
    %5 = vector.broadcast %4 : vector<1x32xi32> to vector<16x32xi32>
    %6 = vector.broadcast %3 : vector<16x1xi32> to vector<16x32xi32>
    %7 = arith.cmpi eq, %5, %6 : vector<16x32xi32>
    %cst_3 = arith.constant 0.000000e+00 : f32
    %8 = vector.broadcast %cst_3 : f32 to vector<16x32xf32>
    %9 = arith.select %7, %0, %8 : vector<16x32xi1>, vector<16x32xf32>
    %cst_4 = arith.constant dense<0.000000e+00> : vector<16xf32>
    %10 = vector.multi_reduction <add>, %9, %cst_4 [1] : vector<16x32xf32> to vector<16xf32>
    %11 = vector.shape_cast %10 : vector<16xf32> to vector<16x1xf32>
    %12 = vector.broadcast %2 : vector<16x1xf32> to vector<16x32xf32>
    %13 = arith.subf %0, %12 : vector<16x32xf32>
    %14 = math.exp %13 : vector<16x32xf32>
    %cst_5 = arith.constant dense<0.000000e+00> : vector<16xf32>
    %15 = vector.multi_reduction <add>, %14, %cst_5 [1] : vector<16x32xf32> to vector<16xf32>
    %16 = vector.shape_cast %15 : vector<16xf32> to vector<16x1xf32>
    %17 = math.log %16 : vector<16x1xf32>
    %18 = arith.addf %2, %17 : vector<16x1xf32>
    %19 = arith.subf %18, %11 : vector<16x1xf32>
    %c16_i32 = arith.constant 16 : i32
    %20 = arith.muli %arg0, %c16_i32 : i32
    %21 = tpu.iota {dimensions = array<i32: 0>} : vector<16x1xi32>
    %22 = vector.broadcast %20 : i32 to vector<16x1xi32>
    %23 = arith.addi %22, %21 : vector<16x1xi32>
    %c16_i32_6 = arith.constant 16 : i32
    %24 = vector.broadcast %c16_i32_6 : i32 to vector<16x1xi32>
    %25 = arith.cmpi slt, %23, %24 : vector<16x1xi32>
    %cst_7 = arith.constant 0.000000e+00 : f32
    %26 = vector.broadcast %cst_7 : f32 to vector<16x1xf32>
    %27 = arith.select %25, %19, %26 : vector<16x1xi1>, vector<16x1xf32>
    %28 = vector.shape_cast %27 : vector<16x1xf32> to vector<1x16x1xf32>
    %cst_8 = arith.constant dense<0.000000e+00> : vector<1xf32>
    %29 = vector.multi_reduction <add>, %28, %cst_8 [1, 2] : vector<1x16x1xf32> to vector<1xf32>
    %30 = vector.shape_cast %29 : vector<1xf32> to vector<1x1x1xf32>
    %31 = vector.extract %30[0, 0, 0] : f32 from vector<1x1x1xf32>
    %32 = vector.broadcast %31 : f32 to vector<1x1x1xf32>
    %33 = vector.shape_cast %32 : vector<1x1x1xf32> to vector<1x1x1xf32>
    %34 = vector.broadcast %33 : vector<1x1x1xf32> to vector<1x8x128xf32>
    %c0_9 = arith.constant 0 : index
    %c0_10 = arith.constant 0 : index
    %c0_11 = arith.constant 0 : index
    %35 = vector.load %arg3[%c0_9, %c0_10, %c0_11] : memref<1x8x128xf32, #tpu.memory_space<vmem>>, vector<1x8x128xf32>
    tpu.vector_store %arg3[%c0_9, %c0_10, %c0_11], %34 {strides = array<i32>} : memref<1x8x128xf32, #tpu.memory_space<vmem>>, vector<1x8x128xf32>,
    return
  }
  func.func @transform_0(%arg0: i32) -> (i32, i32) {
    %c0_i32 = arith.constant 0 : i32
    %c0_i32_0 = arith.constant 0 : i32
    return %arg0, %c0_i32 : i32, i32
  }
  func.func @transform_1(%arg0: i32) -> (i32, i32) {
    %c0_i32 = arith.constant 0 : i32
    %c0_i32_0 = arith.constant 0 : i32
    return %arg0, %c0_i32 : i32, i32
  }
  func.func @transform_2(%arg0: i32) -> (i32, i32, i32) {
    %c0_i32 = arith.constant 0 : i32
    %c0_i32_0 = arith.constant 0 : i32
    %c0_i32_1 = arith.constant 0 : i32
    return %arg0, %c0_i32, %c0_i32_0 : i32, i32, i32
  }
}

</mosaic_0001>

<llo_original>
// kernel: tpu_custom_call.1
$region0: #{tpu_custom_call.1}
  #allocation0 [shape = 'u32[]', space=smem, size = 0x4, offset = 0x4, fixed_abs, tag = 'smem constant byte address 0x4 - core index']
  #allocation1 [shape = 'u32[144,128]{1,0:T(1,128)}', space=vmem, size = 0x12000, scoped, tag = 'internal scratch']
  %s0 = inlined_call_operand.vmem [shape: f32[16,32], index: 0, kind: input, shape index: {}]
  %s1 = inlined_call_operand.vmem [shape: s32[16,1], index: 1, kind: input, shape index: {}]
  %s2 = inlined_call_operand.hbm [shape: f32[1,8,128], index: 2, kind: output, shape index: {}]
  %s3 = sld [smem:[#allocation0]]
  $region18: #{tpu_custom_call.1} parent=0
    _
  %s5 = ssub.s32 1, %s3
  %s6 = scalar_select 0, %s5, %s3
  $region1: #{tpu_custom_call.1} parent=0
    #allocation2 [shape = 'u8[4096]{0}', space=vmem, size = 0x1000, scoped, tag = 'output window, operand 0, single buffered']
    #allocation3 [shape = 's32[1]{0}', space=sflag, size = 0x4, scoped, tag = 'scoped memory for tpu_custom_call.1']
    %7 = vsyncpa [#allocation3], 0
    // Predicated region
    $region2: #{tpu_custom_call.1} parent=1 // pred_check
      _
    $region3: #{tpu_custom_call.1} parent=1 // pred_check_branch
      %9 = sbr.rel (0) target = $region5
    $region4: #{tpu_custom_call.1} parent=1 // pred_region
      _
    $region5: #{tpu_custom_call.1} parent=1 // pred_fallthru
      _
    // Predicated region
    $region6: #{tpu_custom_call.1} parent=1 // pred_check
      _
    $region7: #{tpu_custom_call.1} parent=1 // pred_check_branch
      %11 = sbr.rel (0) target = $region9
    $region8: #{tpu_custom_call.1} parent=1 // pred_region
      _
    $region9: #{tpu_custom_call.1} parent=1 // pred_fallthru
      _
    %v12 = vld [vmem:[%s0] sm:$0xff]
    %v13 = vld [vmem:[%s0 + $0x8] sm:$0xff]
    %vm14 = vcmask 261120
    %v15 = vsel %vm14, %v12, -inf
    %16 = vmax.xlane.f32.xlu0 %v15
    %v17 = vpop.xlane.xlu0 %16
    %v18 = vsel %vm14, %v13, -inf
    %19 = vmax.xlane.f32.xlu0 %v18
    %v20 = vpop.xlane.xlu0 %19
    %v21 = vld [vmem:[%s1] sm:$0xff]
    %v22 = vld [vmem:[%s1 + $0x8] sm:$0xff]
    %v23 = vlaneseq
    %v24 = vand.u32 %v23, 127
    %25 = vset.pattern.permute.xlu0 0
    %26 = vperm.xlu0 %25, %v21
    %v27 = vpop.permute.xlu0 %26
    %28 = vset.pattern.permute.xlu0 0
    %29 = vperm.xlu0 %28, %v22
    %v30 = vpop.permute.xlu0 %29
    %vm31 = vcmp.eq.s32.totalorder %v24, %v27
    %vm32 = vcmp.eq.s32.totalorder %v24, %v30
    %v33 = vsel %vm31, %v12, 0.0
    %v34 = vsel %vm32, %v13, 0.0
    %v35 = vsel %vm14, %v33, 0.0
    %36 = vadd.xlane.f32.xlu0 %v35
    %v37 = vpop.xlane.xlu0 %36
    %v38 = vsel %vm14, %v34, 0.0
    %39 = vadd.xlane.f32.xlu0 %v38
    %v40 = vpop.xlane.xlu0 %39
    %v41 = vsub.f32 %v12, %v17
    %v42 = vsub.f32 %v13, %v20
    %v43 = vmul.f32 %v41, 1.442695
    %v44 = vpow.pop %v43
    %v45 = vmul.f32 %v42, 1.442695
    %v46 = vpow.pop %v45
    %v47 = vsel %vm14, %v44, 0.0
    %48 = vadd.xlane.f32.xlu0 %v47
    %v49 = vpop.xlane.xlu0 %48
    %v50 = vsel %vm14, %v46, 0.0
    %51 = vadd.xlane.f32.xlu0 %v50
    %v52 = vpop.xlane.xlu0 %51
    %v53 = vlog2.pop %v49
    %v54 = vmul.f32 %v53, 0.6931472
    %v55 = vlog2.pop %v52
    %v56 = vmul.f32 %v55, 0.6931472
    %v57 = vadd.f32 %v17, %v54
    %v58 = vadd.f32 %v20, %v56
    %v59 = vsub.f32 %v57, %v37
    %v60 = vsub.f32 %v58, %v40
    %s61 = smul.u32 0, 16
    %v62 = vlaneseq
    %v63 = vshrl.u32 %v62, 7
    %v64 = vadd.s32 %v63, 8
    %v65 = vstv %s61
    %v66 = vadd.s32 %v65, %v63
    %v67 = vadd.s32 %v65, %v64
    %vm68 = vcmp.lt.s32.totalorder %v66, 16
    %vm69 = vcmp.lt.s32.totalorder %v67, 16
    %v70 = vsel %vm68, %v59, 0.0
    %v71 = vsel %vm69, %v60, 0.0
    %vm72 = vcmask 7168
    %v73 = vsel %vm72, %v70, 0.0
    %v74 = vsel %vm72, %v71, 0.0
    %v75 = vadd.f32 %v73, %v74
    %76 = vadd.xlane.f32.xlu0 %v75
    %v77 = vpop.xlane.xlu0 %76
    %v78 = vrot.slane %v77, 4
    %v79 = vadd.f32 %v77, %v78
    %v80 = vrot.slane %v79, 2
    %v81 = vadd.f32 %v79, %v80
    %v82 = vrot.slane %v81, 1
    %v83 = vadd.f32 %v81, %v82
    %s84 = vtos %v83
    %v85 = vstv %s84
    %86 = vst [vmem:[#allocation2] sm:$0xff] %v85
    // Predicated region
    $region10: #{tpu_custom_call.1} parent=1 // pred_check
      _
    $region11: #{tpu_custom_call.1} parent=1 // pred_check_branch
      %88 = sbr.rel (0) target = $region13
    $region12: #{tpu_custom_call.1} parent=1 // pred_region
      %s90 = ssub.s32 128, 128
      %91 = vsyncadd [#allocation3], %s90
      %s93 = sshll.u32 [#allocation2], 4
      %s94 = int_to_ptr.vmem [resolvable:$true] %s93
      %96 = dma.vmem_to_hbm [thread:$0]  %s94, 128, %s2, [#allocation3]
    $region13: #{tpu_custom_call.1} parent=1 // pred_fallthru
      _
    // Predicated region
    $region14: #{tpu_custom_call.1} parent=1 // pred_check
      _
    $region15: #{tpu_custom_call.1} parent=1 // pred_check_branch
      %98 = sbr.rel (0) target = $region17
    $region16: #{tpu_custom_call.1} parent=1 // pred_region
      %99 = dma.done [#allocation3], 128
    $region17: #{tpu_custom_call.1} parent=1 // pred_fallthru
      _
    %100 = vsyncpa [#allocation3], 1

</llo_original>
